<compile_context>
chip_gen: v6e
topology: v6e:2x2x1
jax: 0.10.0
libtpu: 0.0.40
codegen_flags: <defaults>
</compile_context>

<pallas_src>
import functools
import math

import jax
import jax.numpy as jnp
import numpy as np
from jax.experimental import pallas as pl
from jax.experimental.pallas import tpu as pltpu


# ---------------------------------------------------------------------------
# Pallas kernel: per-sample dice partials (+ per-sample maxes for thresholds)
# ---------------------------------------------------------------------------
def _dice_partials_kernel(x_ref, t_ref, out_ref,
                          inter_acc, den_acc, mx_acc, mt_acc):
    j = pl.program_id(1)
    nj = pl.num_programs(1)

    @pl.when(j == 0)
    def _init():
        inter_acc[...] = jnp.zeros_like(inter_acc)
        den_acc[...] = jnp.zeros_like(den_acc)
        mx_acc[...] = jnp.full_like(mx_acc, -jnp.inf)
        mt_acc[...] = jnp.full_like(mt_acc, -jnp.inf)

    x = x_ref[0].astype(jnp.float32)          # (TR, 128) tile of one sample
    t = t_ref[0].astype(jnp.float32)

    # Single pass over both tiles: pure VPU elementwise accumulation; no XLU
    # reductions and no SMEM scalar round-trips on the per-tile critical path.
    inter_acc[...] += x * t
    den_acc[...] += x * x + t * t             # p == 2
    mx_acc[...] = jnp.maximum(mx_acc[...], x)
    mt_acc[...] = jnp.maximum(mt_acc[...], t)

    @pl.when(j == nj - 1)
    def _finalize():
        # Cross-lane/sublane reduction only once per sample.
        inter = jnp.sum(inter_acc[...])
        den = jnp.sum(den_acc[...])
        mx = jnp.max(mx_acc[...])
        mt = jnp.max(mt_acc[...])
        lane = jax.lax.broadcasted_iota(jnp.int32, (8, 128), 1)
        plane = jnp.where(lane == 0, inter,
                jnp.where(lane == 1, den,
                jnp.where(lane == 2, mx,
                jnp.where(lane == 3, mt, 0.0))))
        out_ref[0] = plane


def _pick_row_tile(r, max_rows=2048):
    """Largest row tile <= max_rows (~1 MiB f32 per input block) dividing r."""
    if r <= max_rows:
        return r
    for tr in range(max_rows - max_rows % 8, 7, -8):  # multiples of 8
        if r % tr == 0:
            return tr
    # TODO(synk): ragged last tile would need masking; fall back to one block.
    return r


def dice_partials(predict, target):
    """Returns per-sample (inter, den) sums and the global maxes of each input."""
    n = predict.shape[0]
    d = 1
    for s in predict.shape[1:]:
        d *= s
    assert d % 128 == 0, "flattened per-sample size must be a multiple of 128"
    r = d // 128
    tr = _pick_row_tile(r)
    assert r % tr == 0

    # No dtype cast here (kernel casts per tile) -> no extra HBM copy.
    x = predict.reshape(n, r, 128)
    t = target.reshape(n, r, 128)

    partials = pl.pallas_call(
        _dice_partials_kernel,
        out_shape=jax.ShapeDtypeStruct((n, 8, 128), jnp.float32),
        grid_spec=pltpu.PrefetchScalarGridSpec(
            num_scalar_prefetch=0,
            grid=(n, r // tr),                       # reduction axis last
            in_specs=[
                pl.BlockSpec((1, tr, 128), lambda i, j: (i, j, 0)),
                pl.BlockSpec((1, tr, 128), lambda i, j: (i, j, 0)),
            ],
            out_specs=pl.BlockSpec((1, 8, 128), lambda i, j: (i, 0, 0)),
            scratch_shapes=[pltpu.VMEM((tr, 128), jnp.float32)] * 4,
        ),
        compiler_params=pltpu.CompilerParams(
            # batch axis can be sharded across TensorCores (v7x megacore);
            # the row/reduction axis is a sequential accumulation.
            dimension_semantics=("parallel", "arbitrary")),
    )(x, t)

    inter = partials[:, 0, 0]          # (N,)  sum(x * t) per sample
    den = partials[:, 0, 1]            # (N,)  sum(x^2 + t^2) per sample
    max_x = jnp.max(partials[:, 0, 2])  # global max(predict)
    max_t = jnp.max(partials[:, 0, 3])  # global max(target)
    return inter, den, max_x, max_t


# ---------------------------------------------------------------------------
# Blob penalty: connected components (kornia-style) + unique counting.
# TODO(synk): data-dependent, dynamic-shape op (torch.unique) — implemented in
# plain JAX + NumPy in the wrapper, not as a Pallas kernel.
# ---------------------------------------------------------------------------
@functools.partial(jax.jit, static_argnums=(1,))
def _connected_components(mask, num_iterations):
    """Equivalent of kornia.contrib.connected_components (max-pool label prop)."""
    h, w = mask.shape[-2], mask.shape[-1]
    m = mask.reshape(-1, h, w)
    b = m.shape[0]
    fg = m > 0
    init = jnp.arange(b * h * w, dtype=jnp.float32).reshape(b, h, w)
    out0 = jnp.where(fg, init, 0.0)

    def body(_, out):
        pooled = jax.lax.reduce_window(
            out, -jnp.inf, jax.lax.max,
            window_dimensions=(1, 3, 3),
            window_strides=(1, 1, 1),
            padding="SAME")
        return jnp.where(fg, pooled, out)

    out = jax.lax.fori_loop(0, num_iterations, body, out0)
    return out.reshape(mask.shape)


def _blob_number_penalty(pred_mask, tgt_mask, batch, num_iterations=200):
    labels = _connected_components(pred_mask, num_iterations)
    tgt_labels = _connected_components(tgt_mask, num_iterations)
    num_label_blobs = int(np.unique(np.asarray(labels)).size) - 1
    num_target_blobs = int(np.unique(np.asarray(tgt_labels)).size)
    if num_target_blobs == 0:
        penalty = float("inf")
    else:
        penalty = math.sqrt(num_label_blobs / num_target_blobs)
    if math.isinf(penalty) or math.isnan(penalty):
        penalty = float(batch)
    if penalty < 1.0:
        penalty = 1.0
    if penalty > float(batch):
        penalty = float(batch)
    return penalty


# ---------------------------------------------------------------------------
# Full forward pass of BinaryDiceLoss_blobPunish
# ---------------------------------------------------------------------------
def binary_dice_loss_blob_punish(predict, target, *, smooth=1.0, p=2,
                                 reduction="mean", cc_iterations=200):
    assert predict.shape[0] == target.shape[0], \
        "predict & target batch size don't match"
    assert p == 2, "kernel implements the module default p=2"
    n = predict.shape[0]

    inter, den, max_x, max_t = dice_partials(predict, target)

    pred_mask = (predict > max_x / 2).astype(jnp.float32)
    tgt_mask = (target > max_t / 2).astype(jnp.float32)
    penalty = _blob_number_penalty(pred_mask, tgt_mask, n, cc_iterations)

    loss = 1.0 - (inter + smooth) / (den + smooth)   # (N,)
    if reduction == "mean":
        return jnp.mean(loss) * penalty
    if reduction == "sum":
        return jnp.sum(loss) * penalty
    if reduction == "none":
        return loss * penalty
    raise Exception("Unexpected reduction {}".format(reduction))


# ---------------------------------------------------------------------------
# Pure-JAX/NumPy reference mirroring the PyTorch module
# ---------------------------------------------------------------------------
def _reference_loss(predict, target, smooth=1.0, cc_iterations=200):
    n = predict.shape[0]
    pred_mask = (predict > jnp.max(predict) / 2).astype(jnp.float32)
    tgt_mask = (target > jnp.max(target) / 2).astype(jnp.float32)
    labels = _connected_components(pred_mask, cc_iterations)
    tgt_labels = _connected_components(tgt_mask, cc_iterations)
    num_label_blobs = int(np.unique(np.asarray(labels)).size) - 1
    num_target_blobs = int(np.unique(np.asarray(tgt_labels)).size)
    penalty = (math.sqrt(num_label_blobs / num_target_blobs)
               if num_target_blobs else float("inf"))
    if math.isinf(penalty) or math.isnan(penalty):
        penalty = float(n)
    penalty = min(max(penalty, 1.0), float(n))

    pf = predict.reshape(n, -1)
    tf = target.reshape(n, -1)
    num = jnp.sum(pf * tf, axis=1) + smooth
    den = jnp.sum(pf * pf + tf * tf, axis=1) + smooth
    loss = 1.0 - num / den
    return jnp.mean(loss) * penalty


if __name__ == "__main__":
    # Small segmentation-like shapes: N=2, C=1, H=W=16 (NCHW).
    key = jax.random.PRNGKey(0)
    k_p, k_t = jax.random.split(key)
    N, C, H, W = 2, 1, 16, 16

    predict = jax.random.uniform(k_p, (N, C, H, W), dtype=jnp.float32)
    target = (jax.random.uniform(k_t, (N, C, H, W)) < 0.3).astype(jnp.float32)

    loss = binary_dice_loss_blob_punish(predict, target)
    loss = jax.block_until_ready(loss)

    ref = jax.block_until_ready(_reference_loss(predict, target))
    assert jnp.allclose(loss, ref, atol=1e-5, rtol=1e-5), (loss, ref)

    print("KERNEL_OK")
</pallas_src>

<mosaic_0001>
module attributes {stable_mosaic.version = 11 : i64} {
  func.func @_dice_partials_kernel(%arg0: i32, %arg1: i32, %arg2: memref<1x2x128xf32, #tpu.memory_space<vmem>>, %arg3: memref<1x2x128xf32, #tpu.memory_space<vmem>>, %arg4: memref<1x8x128xf32, #tpu.memory_space<vmem>>, %arg5: memref<2x128xf32, #tpu.memory_space<vmem>>, %arg6: memref<2x128xf32, #tpu.memory_space<vmem>>, %arg7: memref<2x128xf32, #tpu.memory_space<vmem>>, %arg8: memref<2x128xf32, #tpu.memory_space<vmem>>) attributes {dimension_semantics = [#tpu.dimension_semantics<parallel>, #tpu.dimension_semantics<arbitrary>], iteration_bounds = array<i64: 2, 1>, scalar_prefetch = 0 : i64, scratch_operands = 4 : i64, tpu.core_type = #tpu.core_type<tc>, window_params = [{transform_indices = @transform_0, window_bounds = array<i64: 1, 2, 128>}, {transform_indices = @transform_1, window_bounds = array<i64: 1, 2, 128>}, {transform_indices = @transform_2, window_bounds = array<i64: 1, 8, 128>}]} {
    %c0_i32 = arith.constant 0 : i32
    %0 = arith.cmpi eq, %arg1, %c0_i32 : i32
    %1 = arith.extui %0 : i1 to i32
    %c0_i32_0 = arith.constant 0 : i32
    %2 = arith.cmpi ne, %1, %c0_i32_0 : i32
    scf.if %2 {
      %cst = arith.constant 0.000000e+00 : f32
      %26 = vector.broadcast %cst : f32 to vector<2x128xf32>
      %c0_24 = arith.constant 0 : index
      %c0_25 = arith.constant 0 : index
      %27 = vector.load %arg5[%c0_24, %c0_25] : memref<2x128xf32, #tpu.memory_space<vmem>>, vector<2x128xf32>
      tpu.vector_store %arg5[%c0_24, %c0_25], %26 {strides = array<i32>} : memref<2x128xf32, #tpu.memory_space<vmem>>, vector<2x128xf32>,
      %cst_26 = arith.constant 0.000000e+00 : f32
      %28 = vector.broadcast %cst_26 : f32 to vector<2x128xf32>
      %c0_27 = arith.constant 0 : index
      %c0_28 = arith.constant 0 : index
      %29 = vector.load %arg6[%c0_27, %c0_28] : memref<2x128xf32, #tpu.memory_space<vmem>>, vector<2x128xf32>
      tpu.vector_store %arg6[%c0_27, %c0_28], %28 {strides = array<i32>} : memref<2x128xf32, #tpu.memory_space<vmem>>, vector<2x128xf32>,
      %cst_29 = arith.constant 0xFF800000 : f32
      %30 = vector.broadcast %cst_29 : f32 to vector<2x128xf32>
      %c0_30 = arith.constant 0 : index
      %c0_31 = arith.constant 0 : index
      %31 = vector.load %arg7[%c0_30, %c0_31] : memref<2x128xf32, #tpu.memory_space<vmem>>, vector<2x128xf32>
      tpu.vector_store %arg7[%c0_30, %c0_31], %30 {strides = array<i32>} : memref<2x128xf32, #tpu.memory_space<vmem>>, vector<2x128xf32>,
      %cst_32 = arith.constant 0xFF800000 : f32
      %32 = vector.broadcast %cst_32 : f32 to vector<2x128xf32>
      %c0_33 = arith.constant 0 : index
      %c0_34 = arith.constant 0 : index
      %33 = vector.load %arg8[%c0_33, %c0_34] : memref<2x128xf32, #tpu.memory_space<vmem>>, vector<2x128xf32>
      tpu.vector_store %arg8[%c0_33, %c0_34], %32 {strides = array<i32>} : memref<2x128xf32, #tpu.memory_space<vmem>>, vector<2x128xf32>,
    } else {
    }
    %c0 = arith.constant 0 : index
    %c0_1 = arith.constant 0 : index
    %c0_2 = arith.constant 0 : index
    %3 = vector.load %arg2[%c0, %c0_1, %c0_2] : memref<1x2x128xf32, #tpu.memory_space<vmem>>, vector<1x2x128xf32>
    %4 = vector.shape_cast %3 : vector<1x2x128xf32> to vector<2x128xf32>
    %c0_3 = arith.constant 0 : index
    %c0_4 = arith.constant 0 : index
    %c0_5 = arith.constant 0 : index
    %5 = vector.load %arg3[%c0_3, %c0_4, %c0_5] : memref<1x2x128xf32, #tpu.memory_space<vmem>>, vector<1x2x128xf32>
    %6 = vector.shape_cast %5 : vector<1x2x128xf32> to vector<2x128xf32>
    %c0_6 = arith.constant 0 : index
    %c0_7 = arith.constant 0 : index
    %7 = vector.load %arg5[%c0_6, %c0_7] : memref<2x128xf32, #tpu.memory_space<vmem>>, vector<2x128xf32>
    %8 = arith.mulf %4, %6 : vector<2x128xf32>
    %9 = arith.addf %7, %8 : vector<2x128xf32>
    %c0_8 = arith.constant 0 : index
    %c0_9 = arith.constant 0 : index
    %10 = vector.load %arg5[%c0_8, %c0_9] : memref<2x128xf32, #tpu.memory_space<vmem>>, vector<2x128xf32>
    tpu.vector_store %arg5[%c0_8, %c0_9], %9 {strides = array<i32>} : memref<2x128xf32, #tpu.memory_space<vmem>>, vector<2x128xf32>,
    %c0_10 = arith.constant 0 : index
    %c0_11 = arith.constant 0 : index
    %11 = vector.load %arg6[%c0_10, %c0_11] : memref<2x128xf32, #tpu.memory_space<vmem>>, vector<2x128xf32>
    %12 = arith.mulf %4, %4 : vector<2x128xf32>
    %13 = arith.mulf %6, %6 : vector<2x128xf32>
    %14 = arith.addf %12, %13 : vector<2x128xf32>
    %15 = arith.addf %11, %14 : vector<2x128xf32>
    %c0_12 = arith.constant 0 : index
    %c0_13 = arith.constant 0 : index
    %16 = vector.load %arg6[%c0_12, %c0_13] : memref<2x128xf32, #tpu.memory_space<vmem>>, vector<2x128xf32>
    tpu.vector_store %arg6[%c0_12, %c0_13], %15 {strides = array<i32>} : memref<2x128xf32, #tpu.memory_space<vmem>>, vector<2x128xf32>,
    %c0_14 = arith.constant 0 : index
    %c0_15 = arith.constant 0 : index
    %17 = vector.load %arg7[%c0_14, %c0_15] : memref<2x128xf32, #tpu.memory_space<vmem>>, vector<2x128xf32>
    %18 = arith.maximumf %17, %4 : vector<2x128xf32>
    %c0_16 = arith.constant 0 : index
    %c0_17 = arith.constant 0 : index
    %19 = vector.load %arg7[%c0_16, %c0_17] : memref<2x128xf32, #tpu.memory_space<vmem>>, vector<2x128xf32>
    tpu.vector_store %arg7[%c0_16, %c0_17], %18 {strides = array<i32>} : memref<2x128xf32, #tpu.memory_space<vmem>>, vector<2x128xf32>,
    %c0_18 = arith.constant 0 : index
    %c0_19 = arith.constant 0 : index
    %20 = vector.load %arg8[%c0_18, %c0_19] : memref<2x128xf32, #tpu.memory_space<vmem>>, vector<2x128xf32>
    %21 = arith.maximumf %20, %6 : vector<2x128xf32>
    %c0_20 = arith.constant 0 : index
    %c0_21 = arith.constant 0 : index
    %22 = vector.load %arg8[%c0_20, %c0_21] : memref<2x128xf32, #tpu.memory_space<vmem>>, vector<2x128xf32>
    tpu.vector_store %arg8[%c0_20, %c0_21], %21 {strides = array<i32>} : memref<2x128xf32, #tpu.memory_space<vmem>>, vector<2x128xf32>,
    %c0_i32_22 = arith.constant 0 : i32
    %23 = arith.cmpi eq, %arg1, %c0_i32_22 : i32
    %24 = arith.extui %23 : i1 to i32
    %c0_i32_23 = arith.constant 0 : i32
    %25 = arith.cmpi ne, %24, %c0_i32_23 : i32
    scf.if %25 {
      %c0_24 = arith.constant 0 : index
      %c0_25 = arith.constant 0 : index
      %26 = vector.load %arg5[%c0_24, %c0_25] : memref<2x128xf32, #tpu.memory_space<vmem>>, vector<2x128xf32>
      %27 = vector.shape_cast %26 : vector<2x128xf32> to vector<1x2x128xf32>
      %cst = arith.constant dense<0.000000e+00> : vector<1xf32>
      %28 = vector.multi_reduction <add>, %27, %cst [1, 2] : vector<1x2x128xf32> to vector<1xf32>
      %29 = vector.shape_cast %28 : vector<1xf32> to vector<1x1x1xf32>
      %30 = vector.extract %29[0, 0, 0] : f32 from vector<1x1x1xf32>
      %c0_26 = arith.constant 0 : index
      %c0_27 = arith.constant 0 : index
      %31 = vector.load %arg6[%c0_26, %c0_27] : memref<2x128xf32, #tpu.memory_space<vmem>>, vector<2x128xf32>
      %32 = vector.shape_cast %31 : vector<2x128xf32> to vector<1x2x128xf32>
      %cst_28 = arith.constant dense<0.000000e+00> : vector<1xf32>
      %33 = vector.multi_reduction <add>, %32, %cst_28 [1, 2] : vector<1x2x128xf32> to vector<1xf32>
      %34 = vector.shape_cast %33 : vector<1xf32> to vector<1x1x1xf32>
      %35 = vector.extract %34[0, 0, 0] : f32 from vector<1x1x1xf32>
      %c0_29 = arith.constant 0 : index
      %c0_30 = arith.constant 0 : index
      %36 = vector.load %arg7[%c0_29, %c0_30] : memref<2x128xf32, #tpu.memory_space<vmem>>, vector<2x128xf32>
      %37 = vector.shape_cast %36 : vector<2x128xf32> to vector<1x2x128xf32>
      %cst_31 = arith.constant dense<0xFF800000> : vector<1xf32>
      %38 = vector.multi_reduction <maximumf>, %37, %cst_31 [1, 2] : vector<1x2x128xf32> to vector<1xf32>
      %39 = vector.shape_cast %38 : vector<1xf32> to vector<1x1x1xf32>
      %40 = vector.extract %39[0, 0, 0] : f32 from vector<1x1x1xf32>
      %c0_32 = arith.constant 0 : index
      %c0_33 = arith.constant 0 : index
      %41 = vector.load %arg8[%c0_32, %c0_33] : memref<2x128xf32, #tpu.memory_space<vmem>>, vector<2x128xf32>
      %42 = vector.shape_cast %41 : vector<2x128xf32> to vector<1x2x128xf32>
      %cst_34 = arith.constant dense<0xFF800000> : vector<1xf32>
      %43 = vector.multi_reduction <maximumf>, %42, %cst_34 [1, 2] : vector<1x2x128xf32> to vector<1xf32>
      %44 = vector.shape_cast %43 : vector<1xf32> to vector<1x1x1xf32>
      %45 = vector.extract %44[0, 0, 0] : f32 from vector<1x1x1xf32>
      %46 = tpu.iota {dimensions = array<i32: 1>} : vector<8x128xi32>
      %c0_i32_35 = arith.constant 0 : i32
      %47 = vector.broadcast %c0_i32_35 : i32 to vector<8x128xi32>
      %48 = arith.cmpi eq, %46, %47 : vector<8x128xi32>
      %c1_i32 = arith.constant 1 : i32
      %49 = vector.broadcast %c1_i32 : i32 to vector<8x128xi32>
      %50 = arith.cmpi eq, %46, %49 : vector<8x128xi32>
      %c2_i32 = arith.constant 2 : i32
      %51 = vector.broadcast %c2_i32 : i32 to vector<8x128xi32>
      %52 = arith.cmpi eq, %46, %51 : vector<8x128xi32>
      %c3_i32 = arith.constant 3 : i32
      %53 = vector.broadcast %c3_i32 : i32 to vector<8x128xi32>
      %54 = arith.cmpi eq, %46, %53 : vector<8x128xi32>
      %cst_36 = arith.constant 0.000000e+00 : f32
      %55 = vector.broadcast %45 : f32 to vector<8x128xf32>
      %56 = vector.broadcast %cst_36 : f32 to vector<8x128xf32>
      %57 = arith.select %54, %55, %56 : vector<8x128xi1>, vector<8x128xf32>
      %58 = vector.broadcast %40 : f32 to vector<8x128xf32>
      %59 = arith.select %52, %58, %57 : vector<8x128xi1>, vector<8x128xf32>
      %60 = vector.broadcast %35 : f32 to vector<8x128xf32>
      %61 = arith.select %50, %60, %59 : vector<8x128xi1>, vector<8x128xf32>
      %62 = vector.broadcast %30 : f32 to vector<8x128xf32>
      %63 = arith.select %48, %62, %61 : vector<8x128xi1>, vector<8x128xf32>
      %c0_37 = arith.constant 0 : index
      %c0_38 = arith.constant 0 : index
      %c0_39 = arith.constant 0 : index
      %64 = vector.load %arg4[%c0_37, %c0_38, %c0_39] : memref<1x8x128xf32, #tpu.memory_space<vmem>>, vector<1x8x128xf32>
      %65 = vector.shape_cast %64 : vector<1x8x128xf32> to vector<8x128xf32>
      %66 = vector.shape_cast %63 : vector<8x128xf32> to vector<1x8x128xf32>
      tpu.vector_store %arg4[%c0_37, %c0_38, %c0_39], %66 {strides = array<i32>} : memref<1x8x128xf32, #tpu.memory_space<vmem>>, vector<1x8x128xf32>,
    } else {
    }
    return
  }
  func.func @transform_0(%arg0: i32, %arg1: i32) -> (i32, i32, i32) {
    %c0_i32 = arith.constant 0 : i32
    %c0_i32_0 = arith.constant 0 : i32
    return %arg0, %arg1, %c0_i32 : i32, i32, i32
  }
  func.func @transform_1(%arg0: i32, %arg1: i32) -> (i32, i32, i32) {
    %c0_i32 = arith.constant 0 : i32
    %c0_i32_0 = arith.constant 0 : i32
    return %arg0, %arg1, %c0_i32 : i32, i32, i32
  }
  func.func @transform_2(%arg0: i32, %arg1: i32) -> (i32, i32, i32) {
    %c0_i32 = arith.constant 0 : i32
    %c0_i32_0 = arith.constant 0 : i32
    %c0_i32_1 = arith.constant 0 : i32
    return %arg0, %c0_i32, %c0_i32_0 : i32, i32, i32
  }
}

</mosaic_0001>

<llo_original>
// kernel: tpu_custom_call.1
$region0: #{tpu_custom_call.1}
  #allocation0 [shape = 'u32[]', space=smem, size = 0x4, offset = 0x4, fixed_abs, tag = 'smem constant byte address 0x4 - core index']
  #allocation1 [shape = 'u32[144,128]{1,0:T(1,128)}', space=vmem, size = 0x12000, scoped, tag = 'internal scratch']
  #allocation2 [shape = 'f32[2,128]{1,0:T(2,128)}', space=vmem, size = 0x400, scoped, tag = 'scratch operand']
  #allocation3 [shape = 'f32[2,128]{1,0:T(2,128)}', space=vmem, size = 0x400, scoped, tag = 'scratch operand']
  #allocation4 [shape = 'f32[2,128]{1,0:T(2,128)}', space=vmem, size = 0x400, scoped, tag = 'scratch operand']
  #allocation5 [shape = 'f32[2,128]{1,0:T(2,128)}', space=vmem, size = 0x400, scoped, tag = 'scratch operand']
  %s0 = inlined_call_operand.hbm [shape: f32[2,2,128], index: 0, kind: input, shape index: {}]
  %s1 = inlined_call_operand.hbm [shape: f32[2,2,128], index: 1, kind: input, shape index: {}]
  %s2 = inlined_call_operand.hbm [shape: f32[2,8,128], index: 2, kind: output, shape index: {}]
  %s3 = sld [smem:[#allocation0]]
  $region57: #{tpu_custom_call.1} parent=0
    _
  %s5 = ssub.s32 1, %s3
  %s6 = scalar_select 0, %s5, %s3
  $region1: #{tpu_custom_call.1} parent=0
    #allocation6 [shape = 'u8[2048]{0}', space=vmem, size = 0x800, scoped, tag = 'input window, operand 0']
    #allocation7 [shape = 's32[2]{0}', space=sflag, size = 0x8, scoped, tag = 'scoped memory for tpu_custom_call.1']
    #allocation8 [shape = 's32[2]{0}', space=sflag, size = 0x8, scoped, tag = 'scoped memory for tpu_custom_call.1']
    #allocation9 [shape = 'u8[2048]{0}', space=vmem, size = 0x800, scoped, tag = 'input window, operand 1']
    #allocation10 [shape = 's32[2]{0}', space=sflag, size = 0x8, scoped, tag = 'scoped memory for tpu_custom_call.1']
    #allocation11 [shape = 'u8[8192]{0}', space=vmem, size = 0x2000, scoped, tag = 'output window, operand 0']
    %7 = vsyncpa [#allocation7], 0
    %s8 = scalar_lea.sflag [#allocation7], 1
    %9 = vsyncpa %s8, 0
    %10 = vsyncpa [#allocation10], 0
    %s11 = scalar_lea.sflag [#allocation10], 1
    %12 = vsyncpa %s11, 0
    %13 = vsyncpa [#allocation8], 0
    %s14 = scalar_lea.sflag [#allocation8], 1
    %15 = vsyncpa %s14, 0
    loop: start=0, step=1, limit=4
    $region2: #{tpu_custom_call.1} parent=1 // loop_pre_header
      _
    $region3: #{tpu_custom_call.1} parent=1 // loop_header
      %s17 = sphi 0, %s21
      %p18 = scmp.ge.s32.totalorder %s17, 4
      %s24 = sphi 0, %s36
      %s25 = sphi 0, %s32
      %s26 = sphi 0, %s24
      %s27 = sphi 0, %s25
      %s28 = sphi 0, %s26
      %s29 = sphi 0, %s27
      %s41 = sphi 0, %s43
      %s44 = sphi 0, %s41
      %s45 = sphi 0, %s44
      %s61 = sphi 0, %s45
      %s69 = sphi 0, %s71
      %s72 = sphi 0, %s69
      %s73 = sphi 0, %s72
      %s89 = sphi 0, %s73
      %s95 = sphi 0, %s97
      %s98 = sphi 0, %s95
      %s99 = sphi 0, %s98
      %s115 = sphi 0, %s99
    $region4: #{tpu_custom_call.1} parent=1 // loop_header_branch
      %20 = sbr.rel (%p18) target = $region8
    $region5: #{tpu_custom_call.1} parent=1 // loop_body
      %s22 = ssub.s32 %s17, 1
      %s23 = ssub.s32 %s17, 2
      %s30 = sadd.s32 1, %s25
      %p31 = scmp.ge.s32.totalorder %s30, 1
      %s32 = scalar_select %p31, 0, %s30
      %s33 = sadd.s32 1, %s24
      %s34 = scalar_select %p31, %s33, %s24
      %p35 = scmp.ge.s32.totalorder %s34, 2
      %s36 = scalar_select %p35, 0, %s34
      %s37 = ssub.s32 %s24, %s36
      %s38 = ssub.s32 %s25, %s32
      %s39 = sor.u32 %s37, %s38
      %p40 = scmp.eq.s32.totalorder %s39, 0
      %s42 = sadd.s32 %s41, 1
      %s43 = scalar_select %p40, %s41, %s42
      %p46 = pneg %p40
      %p47 = scmp.eq.s32.totalorder %s17, 1
      %p48 = por %p46, %p47
      %p49 = scmp.ne.s32.totalorder %s41, %s44
      %p50 = scmp.eq.s32.totalorder %s17, 0
      %p51 = por %p49, %p50
      %p52 = scmp.ne.s32.totalorder %s41, %s44
      %p53 = scmp.eq.s32.totalorder %s22, 1
      %p54 = por %p52, %p53
      %p55 = scmp.ne.s32.totalorder %s44, %s45
      %p56 = scmp.eq.s32.totalorder %s22, 0
      %p57 = por %p55, %p56
      %p58 = scmp.ne.s32.totalorder %s44, %s45
      %p59 = scmp.eq.s32.totalorder %s23, 1
      %p60 = por %p58, %p59
      %p62 = scmp.ne.s32.totalorder %s45, %s61
      %p63 = scmp.eq.s32.totalorder %s23, 0
      %p64 = por %p62, %p63
      %s65 = ssub.s32 %s24, %s36
      %s66 = ssub.s32 %s25, %s32
      %s67 = sor.u32 %s65, %s66
      %p68 = scmp.eq.s32.totalorder %s67, 0
      %s70 = sadd.s32 %s69, 1
      %s71 = scalar_select %p68, %s69, %s70
      %p74 = pneg %p68
      %p75 = scmp.eq.s32.totalorder %s17, 1
      %p76 = por %p74, %p75
      %p77 = scmp.ne.s32.totalorder %s69, %s72
      %p78 = scmp.eq.s32.totalorder %s17, 0
      %p79 = por %p77, %p78
      %p80 = scmp.ne.s32.totalorder %s69, %s72
      %p81 = scmp.eq.s32.totalorder %s22, 1
      %p82 = por %p80, %p81
      %p83 = scmp.ne.s32.totalorder %s72, %s73
      %p84 = scmp.eq.s32.totalorder %s22, 0
      %p85 = por %p83, %p84
      %p86 = scmp.ne.s32.totalorder %s72, %s73
      %p87 = scmp.eq.s32.totalorder %s23, 1
      %p88 = por %p86, %p87
      %p90 = scmp.ne.s32.totalorder %s73, %s89
      %p91 = scmp.eq.s32.totalorder %s23, 0
      %p92 = por %p90, %p91
      %s93 = ssub.s32 %s24, %s36
      %p94 = scmp.eq.s32.totalorder %s93, 0
      %s96 = sadd.s32 %s95, 1
      %s97 = scalar_select %p94, %s95, %s96
      %p100 = pneg %p94
      %p101 = scmp.eq.s32.totalorder %s17, 1
      %p102 = por %p100, %p101
      %p103 = scmp.ne.s32.totalorder %s95, %s98
      %p104 = scmp.eq.s32.totalorder %s17, 0
      %p105 = por %p103, %p104
      %p106 = scmp.ne.s32.totalorder %s95, %s98
      %p107 = scmp.eq.s32.totalorder %s22, 1
      %p108 = por %p106, %p107
      %p109 = scmp.ne.s32.totalorder %s98, %s99
      %p110 = scmp.eq.s32.totalorder %s22, 0
      %p111 = por %p109, %p110
      %p112 = scmp.ne.s32.totalorder %s98, %s99
      %p113 = scmp.eq.s32.totalorder %s23, 1
      %p114 = por %p112, %p113
      %p116 = scmp.ne.s32.totalorder %s99, %s115
      %p117 = scmp.eq.s32.totalorder %s23, 0
      %p118 = por %p116, %p117
      %p119 = scmp.le.s32.totalorder 1, %s17
      %p120 = scmp.lt.s32.totalorder %s17, 3
      %p121 = pnand %p119, %p120
      %p122 = pneg %p121
      // Predicated region
      $region9: #{tpu_custom_call.1} parent=5 // pred_check
        _
      $region10: #{tpu_custom_call.1} parent=5 // pred_check_branch
        %124 = sbr.rel (%p121) target = $region12
      $region11: #{tpu_custom_call.1} parent=5 // pred_region
        %s125 = ssub.s32 %s17, 1
      $region12: #{tpu_custom_call.1} parent=5 // pred_fallthru
        _
      %p126 = scmp.lt.s32.totalorder %s17, 2
      // Predicated region
      $region13: #{tpu_custom_call.1} parent=5 // pred_check
        %p127 = pneg %p126
      $region14: #{tpu_custom_call.1} parent=5 // pred_check_branch
        %129 = sbr.rel (%p127) target = $region16
      $region15: #{tpu_custom_call.1} parent=5 // pred_region
        // Predicated region
        $region17: #{tpu_custom_call.1} parent=15 // pred_check
          %p130 = pneg %p51
        $region18: #{tpu_custom_call.1} parent=15 // pred_check_branch
          %132 = sbr.rel (%p130) target = $region20
        $region19: #{tpu_custom_call.1} parent=15 // pred_region
          %s133 = sand.u32 %s41, 1
          %s134 = scalar_lea.sflag [#allocation7], %s133
          %s135 = sand.u32 %s41, 1
          %s136 = smul.addr %s135, 2
          %s137 = scalar_lea.vmem [#allocation6], %s136
          %s139 = ssub.s32 32, 32
          %140 = vsyncadd %s134, %s139
          %s141 = sadd.s32 %s25, %s24
          %s142 = smul.addr %s141, 32
          %s143 = scalar_lea.hbm %s0, %s142
          %s145 = sshll.u32 %s137, 4
          %s146 = int_to_ptr.vmem [resolvable:$true] %s145
          %148 = dma.hbm_to_vmem [thread:$0]  %s143, 32, %s146, %s134
        $region20: #{tpu_custom_call.1} parent=15 // pred_fallthru
          _
        // Predicated region
        $region21: #{tpu_custom_call.1} parent=15 // pred_check
          %p149 = pneg %p79
        $region22: #{tpu_custom_call.1} parent=15 // pred_check_branch
          %151 = sbr.rel (%p149) target = $region24
        $region23: #{tpu_custom_call.1} parent=15 // pred_region
          %s152 = sand.u32 %s69, 1
          %s153 = scalar_lea.sflag [#allocation10], %s152
          %s154 = sand.u32 %s69, 1
          %s155 = smul.addr %s154, 2
          %s156 = scalar_lea.vmem [#allocation9], %s155
          %s158 = ssub.s32 32, 32
          %159 = vsyncadd %s153, %s158
          %s160 = sadd.s32 %s25, %s24
          %s161 = smul.addr %s160, 32
          %s162 = scalar_lea.hbm %s1, %s161
          %s164 = sshll.u32 %s156, 4
          %s165 = int_to_ptr.vmem [resolvable:$true] %s164
          %167 = dma.hbm_to_vmem [thread:$0]  %s162, 32, %s165, %s153
        $region24: #{tpu_custom_call.1} parent=15 // pred_fallthru
          _
      $region16: #{tpu_custom_call.1} parent=5 // pred_fallthru
        _
      %p168 = scmp.le.s32.totalorder 1, %s17
      %p169 = scmp.lt.s32.totalorder %s17, 3
      %p170 = pnand %p168, %p169
      %p171 = pneg %p170
      // Predicated region
      $region25: #{tpu_custom_call.1} parent=5 // pred_check
        _
      $region26: #{tpu_custom_call.1} parent=5 // pred_check_branch
        %173 = sbr.rel (%p170) target = $region28
      $region27: #{tpu_custom_call.1} parent=5 // pred_region
        %s174 = ssub.s32 %s17, 1
        %s175 = sand.u32 %s44, 1
        %s176 = scalar_lea.sflag [#allocation7], %s175
        %s177 = sand.u32 %s44, 1
        %s178 = smul.addr %s177, 2
        %s179 = scalar_lea.vmem [#allocation6], %s178
        // Predicated region
        $region29: #{tpu_custom_call.1} parent=27 // pred_check
          %p180 = pneg %p57
        $region30: #{tpu_custom_call.1} parent=27 // pred_check_branch
          %182 = sbr.rel (%p180) target = $region32
        $region31: #{tpu_custom_call.1} parent=27 // pred_region
          %183 = dma.done %s176, 32
        $region32: #{tpu_custom_call.1} parent=27 // pred_fallthru
          _
        %s184 = sand.u32 %s72, 1
        %s185 = scalar_lea.sflag [#allocation10], %s184
        %s186 = sand.u32 %s72, 1
        %s187 = smul.addr %s186, 2
        %s188 = scalar_lea.vmem [#allocation9], %s187
        // Predicated region
        $region33: #{tpu_custom_call.1} parent=27 // pred_check
          %p189 = pneg %p85
        $region34: #{tpu_custom_call.1} parent=27 // pred_check_branch
          %191 = sbr.rel (%p189) target = $region36
        $region35: #{tpu_custom_call.1} parent=27 // pred_region
          %192 = dma.done %s185, 32
        $region36: #{tpu_custom_call.1} parent=27 // pred_fallthru
          _
        %s193 = sand.u32 %s44, 1
        %s194 = scalar_lea.sflag [#allocation7], %s193
        %s195 = sand.u32 %s44, 1
        %s196 = smul.addr %s195, 2
        %s197 = scalar_lea.vmem [#allocation6], %s196
        %p198 = pneg %p57
        %p199 = pneg %p54
        %s200 = sand.u32 %s72, 1
        %s201 = scalar_lea.sflag [#allocation10], %s200
        %s202 = sand.u32 %s72, 1
        %s203 = smul.addr %s202, 2
        %s204 = scalar_lea.vmem [#allocation9], %s203
        %p205 = pneg %p85
        %p206 = pneg %p82
        %p207 = pneg %p111
        %p208 = pneg %p108
        %s209 = sand.u32 %s98, 1
        %s210 = scalar_lea.sflag [#allocation8], %s209
        %s211 = sand.u32 %s98, 1
        %s212 = smul.addr %s211, 8
        %s213 = scalar_lea.vmem [#allocation11], %s212
        %p214 = scmp.eq.s32.totalorder %s27, 0
        // Predicated region
        $region37: #{tpu_custom_call.1} parent=27 // pred_check
          %p215 = pneg %p214
        $region38: #{tpu_custom_call.1} parent=27 // pred_check_branch
          %217 = sbr.rel (%p215) target = $region40
        $region39: #{tpu_custom_call.1} parent=27 // pred_region
          %218 = vst [vmem:[#allocation2] sm:$0x3] 0.0
          %219 = vst [vmem:[#allocation3] sm:$0x3] 0.0
          %220 = vst [vmem:[#allocation4] sm:$0x3] -inf
          %221 = vst [vmem:[#allocation5] sm:$0x3] -inf
        $region40: #{tpu_custom_call.1} parent=27 // pred_fallthru
          _
        %v222 = vld [vmem:[%s179] sm:$0x3]
        %v223 = vld [vmem:[%s188] sm:$0x3]
        %v224 = vld [vmem:[#allocation2] sm:$0x3]
        %v225 = vmul.f32 %v222, %v223
        %v226 = vadd.f32 %v224, %v225
        %227 = vst [vmem:[#allocation2] sm:$0x3] %v226
        %v228 = vld [vmem:[#allocation3] sm:$0x3]
        %v229 = vmul.f32 %v222, %v222
        %v230 = vmul.f32 %v223, %v223
        %v231 = vadd.f32 %v229, %v230
        %v232 = vadd.f32 %v228, %v231
        %233 = vst [vmem:[#allocation3] sm:$0x3] %v232
        %v234 = vld [vmem:[#allocation4] sm:$0x3]
        %v235 = vmax.f32 %v234, %v222
        %236 = vst [vmem:[#allocation4] sm:$0x3] %v235
        %v237 = vld [vmem:[#allocation5] sm:$0x3]
        %v238 = vmax.f32 %v237, %v223
        %239 = vst [vmem:[#allocation5] sm:$0x3] %v238
        // Predicated region
        $region41: #{tpu_custom_call.1} parent=27 // pred_check
          %p240 = pneg %p214
        $region42: #{tpu_custom_call.1} parent=27 // pred_check_branch
          %242 = sbr.rel (%p240) target = $region44
        $region43: #{tpu_custom_call.1} parent=27 // pred_region
          %v243 = vld [vmem:[#allocation2] sm:$0x3]
          %vm244 = vcmask 1041408
          %v245 = vsel %vm244, %v243, 0.0
          %246 = vadd.xlane.f32.xlu0 %v245
          %v247 = vpop.xlane.xlu0 %246
          %v248 = vrot.slane %v247, 4
          %v249 = vadd.f32 %v247, %v248
          %v250 = vrot.slane %v249, 2
          %v251 = vadd.f32 %v249, %v250
          %v252 = vrot.slane %v251, 1
          %v253 = vadd.f32 %v251, %v252
          %s254 = vtos %v253
          %v255 = vld [vmem:[#allocation3] sm:$0x3]
          %v256 = vsel %vm244, %v255, 0.0
          %257 = vadd.xlane.f32.xlu0 %v256
          %v258 = vpop.xlane.xlu0 %257
          %v259 = vrot.slane %v258, 4
          %v260 = vadd.f32 %v258, %v259
          %v261 = vrot.slane %v260, 2
          %v262 = vadd.f32 %v260, %v261
          %v263 = vrot.slane %v262, 1
          %v264 = vadd.f32 %v262, %v263
          %s265 = vtos %v264
          %v266 = vld [vmem:[#allocation4] sm:$0x3]
          %v267 = vsel %vm244, %v266, -inf
          %268 = vmax.xlane.f32.xlu0 %v267
          %v269 = vpop.xlane.xlu0 %268
          %v270 = vrot.slane %v269, 4
          %v271 = vmax.f32 %v269, %v270
          %v272 = vrot.slane %v271, 2
          %v273 = vmax.f32 %v271, %v272
          %v274 = vrot.slane %v273, 1
          %v275 = vmax.f32 %v273, %v274
          %s276 = vtos %v275
          %v277 = vld [vmem:[#allocation5] sm:$0x3]
          %v278 = vsel %vm244, %v277, -inf
          %279 = vmax.xlane.f32.xlu0 %v278
          %v280 = vpop.xlane.xlu0 %279
          %v281 = vrot.slane %v280, 4
          %v282 = vmax.f32 %v280, %v281
          %v283 = vrot.slane %v282, 2
          %v284 = vmax.f32 %v282, %v283
          %v285 = vrot.slane %v284, 1
          %v286 = vmax.f32 %v284, %v285
          %s287 = vtos %v286
          %v288 = vlaneseq
          %v289 = vand.u32 %v288, 127
          %vm290 = vcmp.eq.s32.totalorder %v289, 0
          %vm291 = vcmp.eq.s32.totalorder %v289, 1
          %vm292 = vcmp.eq.s32.totalorder %v289, 2
          %vm293 = vcmp.eq.s32.totalorder %v289, 3
          %v294 = vstv %s287
          %v295 = vsel %vm293, %v294, 0.0
          %v296 = vstv %s276
          %v297 = vsel %vm292, %v296, %v295
          %v298 = vstv %s265
          %v299 = vsel %vm291, %v298, %v297
          %v300 = vstv %s254
          %v301 = vsel %vm290, %v300, %v299
          %302 = vst [vmem:[%s213] sm:$0xff] %v301
        $region44: #{tpu_custom_call.1} parent=27 // pred_fallthru
          _
        %s303 = sand.u32 %s98, 1
        %s304 = scalar_lea.sflag [#allocation8], %s303
        %s305 = sand.u32 %s98, 1
        %s306 = smul.addr %s305, 8
        %s307 = scalar_lea.vmem [#allocation11], %s306
        // Predicated region
        $region45: #{tpu_custom_call.1} parent=27 // pred_check
          %p308 = pneg %p108
        $region46: #{tpu_custom_call.1} parent=27 // pred_check_branch
          %310 = sbr.rel (%p308) target = $region48
        $region47: #{tpu_custom_call.1} parent=27 // pred_region
          %s312 = ssub.s32 128, 128
          %313 = vsyncadd %s304, %s312
          %s314 = smul.addr %s26, 128
          %s315 = scalar_lea.hbm %s2, %s314
          %s317 = sshll.u32 %s307, 4
          %s318 = int_to_ptr.vmem [resolvable:$true] %s317
          %320 = dma.vmem_to_hbm [thread:$0]  %s318, 128, %s315, %s304
        $region48: #{tpu_custom_call.1} parent=27 // pred_fallthru
          _
      $region28: #{tpu_custom_call.1} parent=5 // pred_fallthru
        _
      %p321 = scmp.le.s32.totalorder 2, %s17
      // Predicated region
      $region49: #{tpu_custom_call.1} parent=5 // pred_check
        %p322 = pneg %p321
      $region50: #{tpu_custom_call.1} parent=5 // pred_check_branch
        %324 = sbr.rel (%p322) target = $region52
      $region51: #{tpu_custom_call.1} parent=5 // pred_region
        %s325 = ssub.s32 %s17, 2
        // Predicated region
        $region53: #{tpu_custom_call.1} parent=51 // pred_check
          %p326 = pneg %p114
        $region54: #{tpu_custom_call.1} parent=51 // pred_check_branch
          %328 = sbr.rel (%p326) target = $region56
        $region55: #{tpu_custom_call.1} parent=51 // pred_region
          %s329 = sand.u32 %s99, 1
          %s330 = scalar_lea.sflag [#allocation8], %s329
          %s331 = sand.u32 %s99, 1
          %s332 = smul.addr %s331, 8
          %s333 = scalar_lea.vmem [#allocation11], %s332
          %334 = dma.done %s330, 128
        $region56: #{tpu_custom_call.1} parent=51 // pred_fallthru
          _
      $region52: #{tpu_custom_call.1} parent=5 // pred_fallthru
        _
    $region6: #{tpu_custom_call.1} parent=1 // loop_footer
      %s21 = sadd.s32 1, %s17
    $region7: #{tpu_custom_call.1} parent=1 // loop_footer_branch
      %16 = sbr.rel target = $region3
    $region8: #{tpu_custom_call.1} parent=1 // loop_exit
      _
    %335 = vsyncpa [#allocation7], 1
    %s336 = scalar_lea.sflag [#allocation7], 1
    %337 = vsyncpa %s336, 1
    %338 = vsyncpa [#allocation10], 1
    %s339 = scalar_lea.sflag [#allocation10], 1
    %340 = vsyncpa %s339, 1
    %341 = vsyncpa [#allocation8], 1
    %s342 = scalar_lea.sflag [#allocation8], 1
    %343 = vsyncpa %s342, 1

</llo_original>
